<compile_context>
chip_gen: v5e
topology: v5e:2x2
jax: 0.10.0
libtpu: 0.0.40
codegen_flags: <defaults>
</compile_context>

<pallas_src>
import functools

import jax
import jax.numpy as jnp
from jax.experimental import pallas as pl
from jax.experimental.pallas import tpu as pltpu

_NEG_BIAS = -1e30  # finite "masked" bias; exp underflows to exactly 0 in f32


def _attention_kernel(q_ref, im_ref, pm_ref, mem_ref, bias_ref,
                      wq_ref, wloc_ref, v_ref,
                      ctx_ref, attw_ref,
                      *, use_bf16_eltwise, use_mxu_context):
    # q_ref    : (BT, R)
    # im_ref   : (BT*Tp, 2K)  flattened im2col of attention_weights_cat
    # pm_ref   : (BT, Tp, D)
    # mem_ref  : (BT, Tp, E)
    # bias_ref : (BT, Tp)     additive mask bias (0.0 or -1e30)
    # wq_ref   : (R, D)       query_layer weight (transposed: x @ W)
    # wloc_ref : (2K, D)      folded (location_conv @ location_dense) weight
    # v_ref    : (1, D)       v weight
    # ctx_ref  : (BT, E)
    # attw_ref : (BT, Tp)
    bt, t_len, d = pm_ref.shape

    # processed query: (BT, D) -- MXU
    pq = jnp.dot(q_ref[...], wq_ref[...], preferred_element_type=jnp.float32)

    # location features: one im2col matmul (conv + dense already folded) -- MXU.
    # im_ref is already flattened in the wrapper; the reshape below is a pure
    # leading-dim split (Tp is a multiple of 8), i.e. free layout plumbing.
    pa = jnp.dot(im_ref[...], wloc_ref[...], preferred_element_type=jnp.float32)
    pa = pa.reshape(bt, t_len, d)

    # energies = v . tanh(pq + pa + pm)  -> (BT, Tp); T on lanes.
    s = pq[:, None, :] + pa + pm_ref[...].astype(jnp.float32)
    if use_bf16_eltwise:
        # bf16 EUP (v6e / v7x): ~2x throughput on the EUP-bound tanh phase.
        e = jnp.tanh(s.astype(jnp.bfloat16)).astype(jnp.float32)
    else:
        # v5e has no bf16 VPU/EUP: keep f32.
        e = jnp.tanh(s)
    energies = jnp.sum(e * v_ref[...].astype(jnp.float32), axis=-1)   # (BT, Tp)

    # additive mask bias: one vadd instead of vcmp+vselect; finite value avoids
    # the -inf -> NaN hazard for fully-masked rows.
    energies = energies + bias_ref[...]

    # softmax over time (lane axis); exact normalization (weights are fed back
    # as attention_weights_cat across decoder steps, so avoid approx drift).
    m = jnp.max(energies, axis=-1, keepdims=True)
    p = jnp.exp(energies - m)
    denom = jnp.sum(p, axis=-1, keepdims=True)
    w = p * (1.0 / denom)
    attw_ref[...] = w                                   # lane-dense (BT, Tp) store

    # attention context: MXU only when the tiles actually fill it; otherwise the
    # VPU broadcast-multiply + T-reduction beats BT serialized M=1 matmuls.
    if use_mxu_context:
        ctx = jnp.einsum('bqt,bte->bqe',
                         w[:, None, :].astype(mem_ref.dtype), mem_ref[...],
                         preferred_element_type=jnp.float32)[:, 0, :]
    else:
        ctx = jnp.sum(w[:, :, None] * mem_ref[...].astype(jnp.float32), axis=1)
    ctx_ref[...] = ctx.astype(ctx_ref.dtype)            # lane-dense (BT, E) store


def _has_bf16_eltwise():
    """True on chips with a bf16 VPU/EUP (v6e, v7x); conservative otherwise."""
    try:
        kind = jax.devices()[0].device_kind.lower()
    except Exception:
        return False
    return ("v6" in kind) or ("v7" in kind)


def _vmem_limit_bytes():
    """Generation-aware scoped-VMEM limit with headroom."""
    try:
        cap = int(pltpu.get_tpu_info().vmem_capacity_bytes)
    except Exception:
        cap = 64 * 1024 * 1024          # safe on every generation
    return max(16 * 1024 * 1024, int(0.75 * cap))


def _pick_b_tile(B, per_row_bytes, vmem_limit_bytes, weight_bytes):
    """Largest batch tile whose double-buffered footprint fits ~70% of VMEM.

    Candidates are divisors of B that are multiples of 8 (keeps every block's
    sublane dim (8,128)-aligned) plus B itself (full-extent blocks are always
    legal). On multi-TensorCore chips we then prefer >= 2 grid steps along the
    'parallel' batch axis, as long as the tile stays a multiple of 8.
    """
    budget = 0.7 * vmem_limit_bytes - weight_bytes
    cands = [d for d in range(B, 0, -1)
             if B % d == 0 and (d % 8 == 0 or d == B)]
    fit = [d for d in cands if 2.0 * d * per_row_bytes <= budget]
    if not fit:
        # Even the smallest aligned tile exceeds the budget (very long T).
        # TODO(synk): add a T grid axis with an online-softmax accumulator
        # instead of shrinking the batch tile further.
        fit = [cands[-1]]
    b_tile = fit[0]
    if B // b_tile < 2:
        for d in fit[1:]:
            if d % 8 == 0 and B // d >= 2:
                b_tile = d
                break
    return b_tile


def attention_forward(query, memory, processed_memory, attention_weights_cat,
                      mask, params):
    """Attention forward pass via a single Pallas TPU kernel (batch-tiled grid)."""
    wq, convw, wl, vw = params["wq"], params["convw"], params["wl"], params["v"]
    B, R = query.shape
    _, T, E = memory.shape
    D = wq.shape[1]
    Fn, C, K = convw.shape
    pad = (K - 1) // 2
    two_k = C * K
    Tp = ((T + 7) // 8) * 8     # pad time so in-kernel leading-dim splits are free

    wq = wq.astype(jnp.float32)
    vw = vw.astype(jnp.float32)

    # Fold location conv + location dense into a single (2K, D) matrix (tiny).
    # wloc[(c, k), d] = sum_f convw[f, c, k] * wl[f, d]
    w_loc = jnp.einsum('fck,fd->ckd', convw, wl).reshape(two_k, D)
    w_loc = w_loc.astype(jnp.float32)

    # im2col of the (small) attention_weights_cat tensor, flattened in the
    # wrapper to (B*Tp, 2K) so the kernel never has to merge (bt, Tp) -> bt*Tp.
    # im2col[b, t, c*K + k] = awc_padded[b, c, t + k]   ("same" conv padding)
    awc_p = jnp.pad(attention_weights_cat.astype(jnp.float32),
                    ((0, 0), (0, 0), (pad, pad)))                    # (B, 2, T+K-1)
    cols = jnp.stack([awc_p[:, :, k:k + T] for k in range(K)], axis=-1)  # (B,2,T,K)
    im2col = jnp.transpose(cols, (0, 2, 1, 3)).reshape(B, T, two_k)
    if Tp != T:
        im2col = jnp.pad(im2col, ((0, 0), (0, Tp - T), (0, 0)))
        memory = jnp.pad(memory, ((0, 0), (0, Tp - T), (0, 0)))
        processed_memory = jnp.pad(processed_memory, ((0, 0), (0, Tp - T), (0, 0)))
    im2col = im2col.reshape(B * Tp, two_k)

    # Additive mask bias (padded time positions are also masked out).
    mask_bias = jnp.where(mask, jnp.float32(_NEG_BIAS), jnp.float32(0.0))
    if Tp != T:
        mask_bias = jnp.pad(mask_bias, ((0, 0), (0, Tp - T)),
                            constant_values=_NEG_BIAS)

    # VMEM-derived batch tile + explicit scoped-VMEM limit.
    mem_bytes = jnp.dtype(memory.dtype).itemsize
    pm_bytes = jnp.dtype(processed_memory.dtype).itemsize
    vmem_limit = _vmem_limit_bytes()
    per_row = (Tp * (two_k * 4 + D * pm_bytes + E * mem_bytes + 4)  # streamed in
               + R * 4 + 4 * (Tp + E))                              # query + outs
    weight_bytes = 4 * 4 * (R * D + two_k * D + D)                  # buffered weights
    b_tile = _pick_b_tile(B, per_row, vmem_limit, weight_bytes)
    grid = (B // b_tile,)

    in_specs = [
        pl.BlockSpec((b_tile, R), lambda b: (b, 0)),                 # query
        pl.BlockSpec((b_tile * Tp, two_k), lambda b: (b, 0)),        # im2col (flat)
        pl.BlockSpec((b_tile, Tp, D), lambda b: (b, 0, 0)),          # processed mem
        pl.BlockSpec((b_tile, Tp, E), lambda b: (b, 0, 0)),          # memory
        pl.BlockSpec((b_tile, Tp), lambda b: (b, 0)),                # mask bias
        pl.BlockSpec((R, D), lambda b: (0, 0)),                      # Wq
        pl.BlockSpec((two_k, D), lambda b: (0, 0)),                  # folded conv+dense
        pl.BlockSpec((1, D), lambda b: (0, 0)),                      # v
    ]
    out_specs = (
        pl.BlockSpec((b_tile, E), lambda b: (b, 0)),                 # context
        pl.BlockSpec((b_tile, Tp), lambda b: (b, 0)),                # attention weights
    )
    out_shapes = (
        jax.ShapeDtypeStruct((B, E), jnp.float32),
        jax.ShapeDtypeStruct((B, Tp), jnp.float32),
    )

    kernel = functools.partial(
        _attention_kernel,
        use_bf16_eltwise=_has_bf16_eltwise(),
        use_mxu_context=(Tp >= 128 and E >= 128),
    )

    ctx, attw = pl.pallas_call(
        kernel,
        out_shape=out_shapes,
        grid_spec=pltpu.PrefetchScalarGridSpec(
            num_scalar_prefetch=0,
            grid=grid,
            in_specs=in_specs,
            out_specs=out_specs,
        ),
        compiler_params=pltpu.CompilerParams(
            dimension_semantics=("parallel",),
            vmem_limit_bytes=vmem_limit,
        ),
    )(query, im2col, processed_memory, memory, mask_bias, wq, w_loc, vw)

    return ctx, attw[:, :T]


def _reference(query, memory, processed_memory, attention_weights_cat, mask,
               params):
    """Plain-JAX reference matching the PyTorch forward (un-folded weights)."""
    wq, convw, wl, vw = params["wq"], params["convw"], params["wl"], params["v"]
    K = convw.shape[2]
    pad = (K - 1) // 2
    T = memory.shape[1]
    memory = memory.astype(jnp.float32)
    processed_memory = processed_memory.astype(jnp.float32)

    pq = query @ wq                                              # (B, D)
    awc_p = jnp.pad(attention_weights_cat, ((0, 0), (0, 0), (pad, pad)))
    conv = jnp.zeros((query.shape[0], convw.shape[0], T), jnp.float32)
    for k in range(K):
        conv = conv + jnp.einsum('bct,fc->bft', awc_p[:, :, k:k + T],
                                 convw[:, :, k])
    pa = jnp.einsum('bft,fd->btd', conv, wl)
    e = jnp.tanh(pq[:, None, :] + pa + processed_memory)
    energies = jnp.einsum('btd,d->bt', e, vw[0])
    energies = jnp.where(mask, -jnp.inf, energies)
    w = jax.nn.softmax(energies, axis=1)
    ctx = jnp.einsum('bt,bte->be', w, memory)
    return ctx, w


if __name__ == "__main__":
    # Module hyperparameters (small, consistent with the PyTorch module)
    B = 2
    attention_rnn_dim = 32              # R
    embedding_dim = 16                  # E
    attention_dim = 32                  # D
    attention_location_n_filters = 8    # F
    attention_location_kernel_size = 5  # K
    T = 8                               # max_time

    key = jax.random.PRNGKey(0)
    keys = jax.random.split(key, 10)

    # Deterministic synthetic parameters (shapes from __init__; no checkpoint load)
    params = {
        # query_layer: Linear(R -> D, bias=False); stored transposed (R, D)
        "wq": (jax.random.normal(keys[0], (attention_rnn_dim, attention_dim),
                                 jnp.float32) * 0.1),
        # location conv: Conv1d(2 -> F, K, bias=False), weight (F, 2, K)
        "convw": (jax.random.normal(keys[1],
                                    (attention_location_n_filters, 2,
                                     attention_location_kernel_size),
                                    jnp.float32) * 0.1),
        # location dense: Linear(F -> D, bias=False); stored transposed (F, D)
        "wl": (jax.random.normal(keys[2],
                                 (attention_location_n_filters, attention_dim),
                                 jnp.float32) * 0.1),
        # v: Linear(D -> 1, bias=False), weight (1, D)
        "v": (jax.random.normal(keys[3], (1, attention_dim),
                                jnp.float32) * 0.1),
        # NOTE: memory_layer of the PyTorch module is unused in forward()
        # (processed_memory is passed in), so it is omitted here.
    }

    # Example inputs. memory / processed_memory are cast to bf16 ONCE here at
    # the producer (they are the dominant streamed tensors; the kernel upcasts
    # only where f32 math is needed).
    query = jax.random.normal(keys[4], (B, attention_rnn_dim), jnp.float32)
    memory = jax.random.normal(keys[5], (B, T, embedding_dim),
                               jnp.float32).astype(jnp.bfloat16)
    processed_memory = jax.random.normal(keys[6], (B, T, attention_dim),
                                         jnp.float32).astype(jnp.bfloat16)
    attention_weights_cat = jax.nn.softmax(
        jax.random.normal(keys[7], (B, 2, T), jnp.float32), axis=-1)
    # mask: last position of batch 1 is padded
    mask = jnp.zeros((B, T), dtype=bool).at[1, T - 1].set(True)

    fwd = jax.jit(attention_forward)
    ctx, attw = fwd(query, memory, processed_memory,
                    attention_weights_cat, mask, params)
    jax.block_until_ready((ctx, attw))

    # Correctness check against a plain-JAX f32 reference (tolerance covers the
    # intentional bf16 streaming inputs / bf16 tanh on v6e+).
    ctx_ref, attw_ref = _reference(query, memory, processed_memory,
                                   attention_weights_cat, mask, params)
    assert jnp.allclose(ctx, ctx_ref, atol=3e-2, rtol=3e-2)
    assert jnp.allclose(attw, attw_ref, atol=3e-2, rtol=3e-2)
    assert jnp.allclose(jnp.sum(attw, axis=1), 1.0, atol=1e-5)  # exact softmax norm

    print("KERNEL_OK")
</pallas_src>

<mosaic_0001>
module attributes {stable_mosaic.version = 11 : i64} {
  func.func @_attention_kernel(%arg0: i32, %arg1: memref<2x32xf32, #tpu.memory_space<vmem>>, %arg2: memref<16x10xf32, #tpu.memory_space<vmem>>, %arg3: memref<2x8x32xbf16, #tpu.memory_space<vmem>>, %arg4: memref<2x8x16xbf16, #tpu.memory_space<vmem>>, %arg5: memref<2x8xf32, #tpu.memory_space<vmem>>, %arg6: memref<32x32xf32, #tpu.memory_space<vmem>>, %arg7: memref<10x32xf32, #tpu.memory_space<vmem>>, %arg8: memref<1x32xf32, #tpu.memory_space<vmem>>, %arg9: memref<2x16xf32, #tpu.memory_space<vmem>>, %arg10: memref<2x8xf32, #tpu.memory_space<vmem>>) attributes {dimension_semantics = [#tpu.dimension_semantics<parallel>], iteration_bounds = array<i64: 1>, scalar_prefetch = 0 : i64, scratch_operands = 0 : i64, tpu.core_type = #tpu.core_type<tc>, window_params = [{transform_indices = @transform_0, window_bounds = array<i64: 2, 32>}, {transform_indices = @transform_1, window_bounds = array<i64: 16, 10>}, {transform_indices = @transform_2, window_bounds = array<i64: 2, 8, 32>}, {transform_indices = @transform_3, window_bounds = array<i64: 2, 8, 16>}, {transform_indices = @transform_4, window_bounds = array<i64: 2, 8>}, {pipeline_mode = #tpu.pipeline_mode<synchronous>, transform_indices = @transform_5, window_bounds = array<i64: 32, 32>}, {pipeline_mode = #tpu.pipeline_mode<synchronous>, transform_indices = @transform_6, window_bounds = array<i64: 10, 32>}, {pipeline_mode = #tpu.pipeline_mode<synchronous>, transform_indices = @transform_7, window_bounds = array<i64: 1, 32>}, {transform_indices = @transform_8, window_bounds = array<i64: 2, 16>}, {transform_indices = @transform_9, window_bounds = array<i64: 2, 8>}]} {
    %c0 = arith.constant 0 : index
    %c0_0 = arith.constant 0 : index
    %0 = vector.load %arg1[%c0, %c0_0] : memref<2x32xf32, #tpu.memory_space<vmem>>, vector<2x32xf32>
    %c0_1 = arith.constant 0 : index
    %c0_2 = arith.constant 0 : index
    %1 = vector.load %arg6[%c0_1, %c0_2] : memref<32x32xf32, #tpu.memory_space<vmem>>, vector<32x32xf32>
    %cst = arith.constant dense<0.000000e+00> : vector<2x32xf32>
    %2 = tpu.matmul %0, %1, %cst {dimension_numbers = #tpu.dot_dimension_numbers<[1], [0], [0], [1], [0, 0, 1, 1], [], []>} : vector<2x32xf32>, vector<32x32xf32>, vector<2x32xf32> -> vector<2x32xf32>
    %c0_3 = arith.constant 0 : index
    %c0_4 = arith.constant 0 : index
    %3 = vector.load %arg2[%c0_3, %c0_4] : memref<16x10xf32, #tpu.memory_space<vmem>>, vector<16x10xf32>
    %c0_5 = arith.constant 0 : index
    %c0_6 = arith.constant 0 : index
    %4 = vector.load %arg7[%c0_5, %c0_6] : memref<10x32xf32, #tpu.memory_space<vmem>>, vector<10x32xf32>
    %cst_7 = arith.constant dense<0.000000e+00> : vector<16x32xf32>
    %5 = tpu.matmul %3, %4, %cst_7 {dimension_numbers = #tpu.dot_dimension_numbers<[1], [0], [0], [1], [0, 0, 1, 1], [], []>} : vector<16x10xf32>, vector<10x32xf32>, vector<16x32xf32> -> vector<16x32xf32>
    %6 = vector.shape_cast %5 : vector<16x32xf32> to vector<2x8x32xf32>
    %7 = vector.shape_cast %2 : vector<2x32xf32> to vector<2x1x32xf32>
    %8 = vector.broadcast %7 : vector<2x1x32xf32> to vector<2x8x32xf32>
    %9 = arith.addf %8, %6 : vector<2x8x32xf32>
    %c0_8 = arith.constant 0 : index
    %c0_9 = arith.constant 0 : index
    %c0_10 = arith.constant 0 : index
    %10 = vector.load %arg3[%c0_8, %c0_9, %c0_10] : memref<2x8x32xbf16, #tpu.memory_space<vmem>>, vector<2x8x32xbf16>
    %11 = arith.extf %10 : vector<2x8x32xbf16> to vector<2x8x32xf32>
    %12 = arith.addf %9, %11 : vector<2x8x32xf32>
    %13 = math.tanh %12 : vector<2x8x32xf32>
    %c0_11 = arith.constant 0 : index
    %c0_12 = arith.constant 0 : index
    %14 = vector.load %arg8[%c0_11, %c0_12] : memref<1x32xf32, #tpu.memory_space<vmem>>, vector<1x32xf32>
    %15 = vector.shape_cast %14 : vector<1x32xf32> to vector<1x1x32xf32>
    %16 = vector.broadcast %15 : vector<1x1x32xf32> to vector<2x8x32xf32>
    %17 = arith.mulf %13, %16 : vector<2x8x32xf32>
    %cst_13 = arith.constant dense<0.000000e+00> : vector<2x8xf32>
    %18 = vector.multi_reduction <add>, %17, %cst_13 [2] : vector<2x8x32xf32> to vector<2x8xf32>
    %c0_14 = arith.constant 0 : index
    %c0_15 = arith.constant 0 : index
    %19 = vector.load %arg5[%c0_14, %c0_15] : memref<2x8xf32, #tpu.memory_space<vmem>>, vector<2x8xf32>
    %20 = arith.addf %18, %19 : vector<2x8xf32>
    %cst_16 = arith.constant dense<0xFF800000> : vector<2xf32>
    %21 = vector.multi_reduction <maximumf>, %20, %cst_16 [1] : vector<2x8xf32> to vector<2xf32>
    %22 = vector.shape_cast %21 : vector<2xf32> to vector<2x1xf32>
    %23 = vector.broadcast %22 : vector<2x1xf32> to vector<2x8xf32>
    %24 = arith.subf %20, %23 : vector<2x8xf32>
    %25 = math.exp %24 : vector<2x8xf32>
    %cst_17 = arith.constant dense<0.000000e+00> : vector<2xf32>
    %26 = vector.multi_reduction <add>, %25, %cst_17 [1] : vector<2x8xf32> to vector<2xf32>
    %27 = vector.shape_cast %26 : vector<2xf32> to vector<2x1xf32>
    %cst_18 = arith.constant 1.000000e+00 : f32
    %28 = vector.broadcast %cst_18 : f32 to vector<2x1xf32>
    %29 = arith.divf %28, %27 : vector<2x1xf32>
    %30 = vector.broadcast %29 : vector<2x1xf32> to vector<2x8xf32>
    %31 = arith.mulf %25, %30 : vector<2x8xf32>
    %c0_19 = arith.constant 0 : index
    %c0_20 = arith.constant 0 : index
    %32 = vector.load %arg10[%c0_19, %c0_20] : memref<2x8xf32, #tpu.memory_space<vmem>>, vector<2x8xf32>
    tpu.vector_store %arg10[%c0_19, %c0_20], %31 {strides = array<i32>} : memref<2x8xf32, #tpu.memory_space<vmem>>, vector<2x8xf32>,
    %33 = vector.shape_cast %31 : vector<2x8xf32> to vector<2x8x1xf32>
    %c0_21 = arith.constant 0 : index
    %c0_22 = arith.constant 0 : index
    %c0_23 = arith.constant 0 : index
    %34 = vector.load %arg4[%c0_21, %c0_22, %c0_23] : memref<2x8x16xbf16, #tpu.memory_space<vmem>>, vector<2x8x16xbf16>
    %35 = arith.extf %34 : vector<2x8x16xbf16> to vector<2x8x16xf32>
    %36 = vector.broadcast %33 : vector<2x8x1xf32> to vector<2x8x16xf32>
    %37 = arith.mulf %36, %35 : vector<2x8x16xf32>
    %cst_24 = arith.constant dense<0.000000e+00> : vector<2x16xf32>
    %38 = vector.multi_reduction <add>, %37, %cst_24 [1] : vector<2x8x16xf32> to vector<2x16xf32>
    %c0_25 = arith.constant 0 : index
    %c0_26 = arith.constant 0 : index
    %39 = vector.load %arg9[%c0_25, %c0_26] : memref<2x16xf32, #tpu.memory_space<vmem>>, vector<2x16xf32>
    tpu.vector_store %arg9[%c0_25, %c0_26], %38 {strides = array<i32>} : memref<2x16xf32, #tpu.memory_space<vmem>>, vector<2x16xf32>,
    return
  }
  func.func @transform_0(%arg0: i32) -> (i32, i32) {
    %c0_i32 = arith.constant 0 : i32
    %c0_i32_0 = arith.constant 0 : i32
    return %arg0, %c0_i32 : i32, i32
  }
  func.func @transform_1(%arg0: i32) -> (i32, i32) {
    %c0_i32 = arith.constant 0 : i32
    %c0_i32_0 = arith.constant 0 : i32
    return %arg0, %c0_i32 : i32, i32
  }
  func.func @transform_2(%arg0: i32) -> (i32, i32, i32) {
    %c0_i32 = arith.constant 0 : i32
    %c0_i32_0 = arith.constant 0 : i32
    %c0_i32_1 = arith.constant 0 : i32
    return %arg0, %c0_i32, %c0_i32_0 : i32, i32, i32
  }
  func.func @transform_3(%arg0: i32) -> (i32, i32, i32) {
    %c0_i32 = arith.constant 0 : i32
    %c0_i32_0 = arith.constant 0 : i32
    %c0_i32_1 = arith.constant 0 : i32
    return %arg0, %c0_i32, %c0_i32_0 : i32, i32, i32
  }
  func.func @transform_4(%arg0: i32) -> (i32, i32) {
    %c0_i32 = arith.constant 0 : i32
    %c0_i32_0 = arith.constant 0 : i32
    return %arg0, %c0_i32 : i32, i32
  }
  func.func @transform_5(%arg0: i32) -> (i32, i32) {
    %c0_i32 = arith.constant 0 : i32
    %c0_i32_0 = arith.constant 0 : i32
    %c0_i32_1 = arith.constant 0 : i32
    return %c0_i32, %c0_i32_0 : i32, i32
  }
  func.func @transform_6(%arg0: i32) -> (i32, i32) {
    %c0_i32 = arith.constant 0 : i32
    %c0_i32_0 = arith.constant 0 : i32
    %c0_i32_1 = arith.constant 0 : i32
    return %c0_i32, %c0_i32_0 : i32, i32
  }
  func.func @transform_7(%arg0: i32) -> (i32, i32) {
    %c0_i32 = arith.constant 0 : i32
    %c0_i32_0 = arith.constant 0 : i32
    %c0_i32_1 = arith.constant 0 : i32
    return %c0_i32, %c0_i32_0 : i32, i32
  }
  func.func @transform_8(%arg0: i32) -> (i32, i32) {
    %c0_i32 = arith.constant 0 : i32
    %c0_i32_0 = arith.constant 0 : i32
    return %arg0, %c0_i32 : i32, i32
  }
  func.func @transform_9(%arg0: i32) -> (i32, i32) {
    %c0_i32 = arith.constant 0 : i32
    %c0_i32_0 = arith.constant 0 : i32
    return %arg0, %c0_i32 : i32, i32
  }
}

</mosaic_0001>

<llo_original>
// kernel: attention_forward.1
$region0: #{attention_forward.1}
  #allocation0 [shape = 'u32[]', space=smem, size = 0x4, offset = 0x4, fixed_abs, tag = 'smem constant byte address 0x4 - core index']
  #allocation1 [shape = 'u32[72,128]{1,0:T(1,128)}', space=vmem, size = 0x9000, scoped, tag = 'internal scratch']
  %s0 = inlined_call_operand.vmem [shape: f32[2,32], index: 0, kind: input, shape index: {}]
  %s1 = inlined_call_operand.vmem [shape: f32[16,10], index: 1, kind: input, shape index: {}]
  %s2 = inlined_call_operand.vmem [shape: bf16[2,8,32], index: 2, kind: input, shape index: {}]
  %s3 = inlined_call_operand.vmem [shape: bf16[2,8,16], index: 3, kind: input, shape index: {}]
  %s4 = inlined_call_operand.vmem [shape: f32[2,8], index: 4, kind: input, shape index: {}]
  %s5 = inlined_call_operand.vmem [shape: f32[32,32], index: 5, kind: input, shape index: {}]
  %s6 = inlined_call_operand.vmem [shape: f32[10,32], index: 6, kind: input, shape index: {}]
  %s7 = inlined_call_operand.vmem [shape: f32[1,32], index: 7, kind: input, shape index: {}]
  %s8 = inlined_call_operand.hbm [shape: f32[2,16], index: 8, kind: output, shape index: {0}]
  %s9 = inlined_call_operand.hbm [shape: f32[2,8], index: 9, kind: output, shape index: {1}]
  %10 = xla_tuple %s8, %s9
  %s11 = sld [smem:[#allocation0]]
  $region50: #{attention_forward.1} parent=0
    _
  %s13 = ssub.s32 1, %s11
  %s14 = scalar_select 0, %s13, %s11
  $region1: #{attention_forward.1} parent=0
    #allocation2 [shape = 'u8[1024]{0}', space=vmem, size = 0x400, scoped, tag = 'output window, operand 0, single buffered']
    #allocation3 [shape = 's32[1]{0}', space=sflag, size = 0x4, scoped, tag = 'scoped memory for attention_forward.1']
    #allocation4 [shape = 'u8[1024]{0}', space=vmem, size = 0x400, scoped, tag = 'output window, operand 1, single buffered']
    #allocation5 [shape = 's32[1]{0}', space=sflag, size = 0x4, scoped, tag = 'scoped memory for attention_forward.1']
    %15 = vsyncpa [#allocation3], 0
    %16 = vsyncpa [#allocation5], 0
    // Predicated region
    $region2: #{attention_forward.1} parent=1 // pred_check
      _
    $region3: #{attention_forward.1} parent=1 // pred_check_branch
      %18 = sbr.rel (0) target = $region5
    $region4: #{attention_forward.1} parent=1 // pred_region
      _
    $region5: #{attention_forward.1} parent=1 // pred_fallthru
      _
    // Predicated region
    $region6: #{attention_forward.1} parent=1 // pred_check
      _
    $region7: #{attention_forward.1} parent=1 // pred_check_branch
      %20 = sbr.rel (0) target = $region9
    $region8: #{attention_forward.1} parent=1 // pred_region
      _
    $region9: #{attention_forward.1} parent=1 // pred_fallthru
      _
    // Predicated region
    $region10: #{attention_forward.1} parent=1 // pred_check
      _
    $region11: #{attention_forward.1} parent=1 // pred_check_branch
      %22 = sbr.rel (0) target = $region13
    $region12: #{attention_forward.1} parent=1 // pred_region
      _
    $region13: #{attention_forward.1} parent=1 // pred_fallthru
      _
    // Predicated region
    $region14: #{attention_forward.1} parent=1 // pred_check
      _
    $region15: #{attention_forward.1} parent=1 // pred_check_branch
      %24 = sbr.rel (0) target = $region17
    $region16: #{attention_forward.1} parent=1 // pred_region
      _
    $region17: #{attention_forward.1} parent=1 // pred_fallthru
      _
    // Predicated region
    $region18: #{attention_forward.1} parent=1 // pred_check
      _
    $region19: #{attention_forward.1} parent=1 // pred_check_branch
      %26 = sbr.rel (0) target = $region21
    $region20: #{attention_forward.1} parent=1 // pred_region
      _
    $region21: #{attention_forward.1} parent=1 // pred_fallthru
      _
    // Predicated region
    $region22: #{attention_forward.1} parent=1 // pred_check
      _
    $region23: #{attention_forward.1} parent=1 // pred_check_branch
      %28 = sbr.rel (0) target = $region25
    $region24: #{attention_forward.1} parent=1 // pred_region
      _
    $region25: #{attention_forward.1} parent=1 // pred_fallthru
      _
    // Predicated region
    $region26: #{attention_forward.1} parent=1 // pred_check
      _
    $region27: #{attention_forward.1} parent=1 // pred_check_branch
      %30 = sbr.rel (0) target = $region29
    $region28: #{attention_forward.1} parent=1 // pred_region
      _
    $region29: #{attention_forward.1} parent=1 // pred_fallthru
      _
    // Predicated region
    $region30: #{attention_forward.1} parent=1 // pred_check
      _
    $region31: #{attention_forward.1} parent=1 // pred_check_branch
      %32 = sbr.rel (0) target = $region33
    $region32: #{attention_forward.1} parent=1 // pred_region
      _
    $region33: #{attention_forward.1} parent=1 // pred_fallthru
      _
    %v33 = vld [vmem:[%s0] sm:$0x3]
    %v34 = vld [vmem:[%s5] sm:$0xff]
    %v35 = vld [vmem:[%s5 + $0x8] sm:$0xff]
    %v36 = vld [vmem:[%s5 + $0x10] sm:$0xff]
    %v37 = vld [vmem:[%s5 + $0x18] sm:$0xff]
    %vm38 = vcmask 261120
    %v40 = vsel %vm38, %v33, 0
    %42 = vmatpush.msra.mxu0 0.0
    %43 = vmatpush.msra.mxu0 0.0
    %44 = vmatpush.msra.mxu0 0.0
    %45 = vmatpush.msra.mxu0 0.0
    %46 = vmatpush.msra.mxu0 0.0
    %47 = vmatpush.msra.mxu0 0.0
    %48 = vmatpush.msra.mxu0 0.0
    %49 = vmatpush.msra.mxu0 0.0
    %50 = vmatpush.msra.mxu0 0.0
    %51 = vmatpush.msra.mxu0 0.0
    %52 = vmatpush.msra.mxu0 0.0
    %53 = vmatpush.msra.mxu0 0.0
    %54 = vmatpush.msra.mxu0 %v37
    %55 = vmatpush.msra.mxu0 %v36
    %56 = vmatpush.msra.mxu0 %v35
    %57 = vmatpush.msra.mxu0 %v34
    %58 = vmatmul.f32.gmra.mxu0 %v40
    %v59 = vpop.f32.mrf.mxu0
    %v60 = vadd.f32 0.0, %v59
    %61 = vdwg.mxu0
    %v62 = vld [vmem:[%s1] sm:$0xff]
    %v63 = vld [vmem:[%s1 + $0x8] sm:$0xff]
    %v64 = vld [vmem:[%s6] sm:$0xff]
    %v65 = vld [vmem:[%s6 + $0x8] sm:$0x3]
    %vm66 = vcmask 80896
    %v68 = vsel %vm66, %v62, 0
    %v71 = vsel %vm66, %v63, 0
    %vm73 = vcmask 1041408
    %v75 = vsel %vm73, %v65, 0
    %77 = vmatpush.msra.mxu0 0.0
    %78 = vmatpush.msra.mxu0 0.0
    %79 = vmatpush.msra.mxu0 0.0
    %80 = vmatpush.msra.mxu0 0.0
    %81 = vmatpush.msra.mxu0 0.0
    %82 = vmatpush.msra.mxu0 0.0
    %83 = vmatpush.msra.mxu0 0.0
    %84 = vmatpush.msra.mxu0 0.0
    %85 = vmatpush.msra.mxu0 0.0
    %86 = vmatpush.msra.mxu0 0.0
    %87 = vmatpush.msra.mxu0 0.0
    %88 = vmatpush.msra.mxu0 0.0
    %89 = vmatpush.msra.mxu0 0.0
    %90 = vmatpush.msra.mxu0 0.0
    %91 = vmatpush.msra.mxu0 %v75
    %92 = vmatpush.msra.mxu0 %v64
    %93 = vmatmul.f32.gmra.mxu0 %v68
    %v94 = vpop.f32.mrf.mxu0
    %v95 = vadd.f32 0.0, %v94
    %96 = vmatmul.f32.gmra.mxu0 %v71
    %v97 = vpop.f32.mrf.mxu0
    %v98 = vadd.f32 0.0, %v97
    %99 = vdwg.mxu0
    %v101 = vrot.slane %v60, 1
    %v102 = vperm.slane %v60, 0
    %v103 = vperm.slane %v101, 0
    %v106 = vadd.f32 %v102, %v95
    %v107 = vadd.f32 %v103, %v98
    %v108 = vld [vmem:[%s2] sm:$0xf]
    %v109 = vld [vmem:[%s2 + $0x4] sm:$0xf]
    %v110 = vunpack.c.l.bf16 %v108
    %v111 = vunpack.c.l.bf16 %v109
    %v112 = vadd.f32 %v106, %v110
    %v113 = vadd.f32 %v107, %v111
    %v114 = vtanh.pop %v112
    %v115 = vtanh.pop %v113
    %v116 = vld [vmem:[%s7] sm:$0x1]
    %v118 = vperm.slane %v116, 0
    %v120 = vmul.f32 %v114, %v118
    %v121 = vmul.f32 %v115, %v118
    %v122 = vsel %vm38, %v120, 0.0
    %123 = vadd.xlane.f32.xlu0 %v122
    %v124 = vpop.xlane.xlu0 %123
    %v125 = vsel %vm38, %v121, 0.0
    %126 = vadd.xlane.f32.xlu0 %v125
    %v127 = vpop.xlane.xlu0 %126
    %v128 = vld [vmem:[%s4] sm:$0x3]
    %v130 = vperm.slane %v128, 0
    %v131 = vlaneseq
    %v132 = vshrl.u32 %v131, 7
    %134 = vset.pattern.permute.xlu0 %v132
    %135 = vperm.xlu0 %134, %v130
    %v136 = vpop.permute.xlu0 %135
    %v137 = vperm.slane %v128, 1
    %v138 = vlaneseq
    %v139 = vshrl.u32 %v138, 7
    %141 = vset.pattern.permute.xlu0 %v139
    %142 = vperm.xlu0 %141, %v137
    %v143 = vpop.permute.xlu0 %142
    %v146 = vadd.f32 %v124, %v136
    %v147 = vadd.f32 %v127, %v143
    %150 = vset.pattern.permute.xlu0 0
    %151 = vperm.xlu0 %150, %v146
    %v152 = vpop.permute.xlu0 %151
    %153 = vset.pattern.permute.xlu0 0
    %154 = vperm.xlu0 %153, %v147
    %v155 = vpop.permute.xlu0 %154
    %v156 = vlaneseq
    %v157 = vand.u32 %v156, 127
    %v158 = vperm.slane %v152, %v157
    %v159 = vperm.slane %v155, %v157
    %vm160 = vcmask 1041409
    %v161 = vsel %vm160, %v159, %v158
    %vm163 = vcmask 58368
    %v164 = vsel %vm163, %v161, -inf
    %165 = vmax.xlane.f32.xlu0 %v164
    %v166 = vpop.xlane.xlu0 %165
    %v168 = vperm.slane %v166, 0
    %v169 = vperm.slane %v166, 1
    %v172 = vsub.f32 %v146, %v168
    %v173 = vsub.f32 %v147, %v169
    %v174 = vmul.f32 %v172, 1.442695
    %v175 = vpow.pop %v174
    %v176 = vmul.f32 %v173, 1.442695
    %v177 = vpow.pop %v176
    %180 = vset.pattern.permute.xlu0 0
    %181 = vperm.xlu0 %180, %v175
    %v182 = vpop.permute.xlu0 %181
    %183 = vset.pattern.permute.xlu0 0
    %184 = vperm.xlu0 %183, %v177
    %v185 = vpop.permute.xlu0 %184
    %v186 = vperm.slane %v182, %v157
    %v187 = vperm.slane %v185, %v157
    %v188 = vsel %vm160, %v187, %v186
    %v190 = vsel %vm163, %v188, 0.0
    %191 = vadd.xlane.f32.xlu0 %v190
    %v192 = vpop.xlane.xlu0 %191
    %v193 = vrcp.pop %v192
    %v194 = vmul.f32 %v192, %v193
    %v195 = vsub.f32 1.0, %v194
    %v196 = vmul.f32 %v193, %v195
    %v197 = vadd.f32 %v193, %v196
    %vm198 = vweird.f32 %v192
    %vm199 = vweird.f32 %v193
    %vm200 = vmor %vm198, %vm199
    %v201 = vsel %vm200, %v193, %v197
    %v202 = vand.u32 2147483647, %v192
    %vm203 = vcmp.eq.f32.partialorder %v202, 8.507059e+37
    %v204 = vand.u32 %v192, 2147483648
    %v205 = vor.u32 1.1754944e-38, %v204
    %v206 = vsel %vm203, %v205, %v201
    %v207 = vmul.f32 1.0, %v206
    %v209 = vperm.slane %v207, 0
    %v210 = vperm.slane %v207, 1
    %v213 = vmul.f32 %v175, %v209
    %v214 = vmul.f32 %v177, %v210
    %217 = vset.pattern.permute.xlu0 0
    %218 = vperm.xlu0 %217, %v213
    %v219 = vpop.permute.xlu0 %218
    %220 = vset.pattern.permute.xlu0 0
    %221 = vperm.xlu0 %220, %v214
    %v222 = vpop.permute.xlu0 %221
    %v223 = vperm.slane %v219, %v157
    %v224 = vperm.slane %v222, %v157
    %v225 = vsel %vm160, %v224, %v223
    %227 = vst.msk [vmem:[#allocation4] sm:$0x3] %vm163, %v225
    %v228 = vld [vmem:[%s3] sm:$0xf]
    %v229 = vld [vmem:[%s3 + $0x4] sm:$0xf]
    %v230 = vunpack.c.l.bf16 %v228
    %v231 = vunpack.c.l.bf16 %v229
    %v234 = vmul.f32 %v219, %v230
    %v235 = vmul.f32 %v222, %v231
    %vm236 = vcmask 130048
    %v237 = vsel %vm236, %v234, 0.0
    %v238 = vrot.slane %v237, 4
    %v239 = vadd.f32 %v237, %v238
    %v240 = vrot.slane %v239, 2
    %v241 = vadd.f32 %v239, %v240
    %v242 = vrot.slane %v241, 1
    %v243 = vadd.f32 %v241, %v242
    %v244 = vsel %vm236, %v235, 0.0
    %v245 = vrot.slane %v244, 4
    %v246 = vadd.f32 %v244, %v245
    %v247 = vrot.slane %v246, 2
    %v248 = vadd.f32 %v246, %v247
    %v249 = vrot.slane %v248, 1
    %v250 = vadd.f32 %v248, %v249
    %v253 = vsel %vm160, %v250, %v243
    %vm255 = vcmask 123904
    %256 = vst.msk [vmem:[#allocation2] sm:$0x3] %vm255, %v253
    // Predicated region
    $region34: #{attention_forward.1} parent=1 // pred_check
      _
    $region35: #{attention_forward.1} parent=1 // pred_check_branch
      %258 = sbr.rel (0) target = $region37
    $region36: #{attention_forward.1} parent=1 // pred_region
      %260 = vsyncadd [#allocation3], 0
      %s262 = sshll.u32 [#allocation2], 4
      %s263 = int_to_ptr.vmem [resolvable:$true] %s262
      %s264 = sshll.u32 %s8, 4
      %s265 = int_to_ptr.hbm [resolvable:$true] %s264
      %267 = dma.vmem_to_hbm [thread:$0]  %s263, 32, %s265, [#allocation3]
    $region37: #{attention_forward.1} parent=1 // pred_fallthru
      _
    // Predicated region
    $region38: #{attention_forward.1} parent=1 // pred_check
      _
    $region39: #{attention_forward.1} parent=1 // pred_check_branch
      %269 = sbr.rel (0) target = $region41
    $region40: #{attention_forward.1} parent=1 // pred_region
      %271 = vsyncadd [#allocation5], 0
      %s273 = sshll.u32 [#allocation4], 4
      %s274 = int_to_ptr.vmem [resolvable:$true] %s273
      %s275 = sshll.u32 %s9, 4
      %s276 = int_to_ptr.hbm [resolvable:$true] %s275
      %278 = dma.vmem_to_hbm [thread:$0]  %s274, 32, %s276, [#allocation5]
    $region41: #{attention_forward.1} parent=1 // pred_fallthru
      _
    // Predicated region
    $region42: #{attention_forward.1} parent=1 // pred_check
      _
    $region43: #{attention_forward.1} parent=1 // pred_check_branch
      %280 = sbr.rel (0) target = $region45
    $region44: #{attention_forward.1} parent=1 // pred_region
      %282 = dma.done [#allocation3], 32
    $region45: #{attention_forward.1} parent=1 // pred_fallthru
      _
    // Predicated region
    $region46: #{attention_forward.1} parent=1 // pred_check
      _
    $region47: #{attention_forward.1} parent=1 // pred_check_branch
      %284 = sbr.rel (0) target = $region49
    $region48: #{attention_forward.1} parent=1 // pred_region
      %286 = dma.done [#allocation5], 32
    $region49: #{attention_forward.1} parent=1 // pred_fallthru
      _
    %287 = vsyncpa [#allocation3], 1
    %288 = vsyncpa [#allocation5], 1

</llo_original>
